<compile_context>
chip_gen: v6e
topology: v6e:2x2x1
jax: 0.10.0
libtpu: 0.0.40
codegen_flags: <defaults>
</compile_context>

<pallas_src>
import functools

import jax
import jax.numpy as jnp
import numpy as np
from jax import lax
from jax.experimental import pallas as pl
from jax.experimental.pallas import tpu as pltpu


def _round_up(x, m):
    return (x + m - 1) // m * m


# =============================================================================
# One-time parameter packing (hoisted out of the per-call forward path)
# =============================================================================
def prepare_params(params):
    """Pack all weights into a single lane-dense (R, 128) f32 slab (one DMA).

    Weights are stored transposed (out, in) so the kernel computes
    y_T = W_T @ x_T in a feature-major layout; biases and other small vectors
    live as columns of one 64-row 'vector block'.  Adjacent linear layers with
    no nonlinearity between them are folded at pack time:
      * speed/command encoder layer-1        -> one block-diagonal matmul
      * speed_pred L1 + action_head L1 o {action_pred, alpha} -> one matmul
    """
    f32 = np.float32
    conv_w, conv_b, proj_w, proj_b = [np.asarray(a, f32) for a in params["backbone"]]
    (sw0, sb0), (sw1, sb1) = [(np.asarray(w, f32), np.asarray(b, f32))
                              for (w, b) in params["speed_encoder"]]
    (cw0, cb0), (cw1, cb1) = [(np.asarray(w, f32), np.asarray(b, f32))
                              for (w, b) in params["command_encoder"]]
    (spw0, spb0), (spw1, spb1) = [(np.asarray(w, f32), np.asarray(b, f32))
                                  for (w, b) in params["speed_pred"]]
    (ahw0, ahb0), (ahw1, ahb1) = [(np.asarray(w, f32), np.asarray(b, f32))
                                  for (w, b) in params["action_head"]]
    ap_w, ap_b = [np.asarray(a, f32) for a in params["action_pred"]]
    al_w, al_b = [np.asarray(a, f32) for a in params["alpha"]]

    KH, KW, Cin, Cout = conv_w.shape
    KK = KH * KW * Cin
    D_IMG = proj_w.shape[1]
    EH = sw0.shape[1]                      # encoder hidden width (speed & cmd)
    D_CMD_IN = cw0.shape[0]
    D_SPEED, D_CMD = sw1.shape[1], cw1.shape[1]
    D_FEAT = D_IMG + D_SPEED + D_CMD
    HID = spw0.shape[1]                    # == ahw0.shape[1]
    D_ACT = ahw1.shape[1]
    HID2 = 2 * HID
    N_OUT = 16                             # [mean 2 | std 2 | alpha 1 | pad 3 | speed 1 | pad 7]

    assert cw0.shape[1] == EH and ahw0.shape[1] == HID
    assert max(KK, D_FEAT, HID2, 2 * EH) <= 128 and D_ACT + 4 <= 128

    # 8-aligned row offsets of each weight block inside the slab
    R_CONV = 0
    R_PROJ = R_CONV + _round_up(Cout, 8)
    R_ENC = R_PROJ + _round_up(D_IMG, 8)
    R_W0 = R_ENC + _round_up(D_SPEED + D_CMD, 8)
    R_FIN = R_W0 + _round_up(HID2, 8)
    R_VEC = R_FIN + _round_up(N_OUT, 8)
    VEC_H = _round_up(max(Cout, D_IMG, EH, D_SPEED + D_CMD, HID2, N_OUT), 8)
    R_TOT = R_VEC + VEC_H

    # vector-block columns (bias / small-weight columns)
    C_CONV_B, C_PROJ_B, C_SW0, C_SB0, C_CB0, C_ENC_B1, C_B0, C_FIN_B, C_CW0 = range(9)
    assert C_CW0 + D_CMD_IN <= 128

    slab = np.zeros((R_TOT, 128), f32)
    slab[R_CONV:R_CONV + Cout, :KK] = conv_w.reshape(KK, Cout).T            # (Cout, KK)
    slab[R_PROJ:R_PROJ + D_IMG, :Cout] = proj_w.T                           # (D_IMG, Cout)

    # encoder layer-1: block-diag(sw1.T, cw1.T)
    enc_w1 = np.zeros((D_SPEED + D_CMD, 2 * EH), f32)
    enc_w1[:D_SPEED, :EH] = sw1.T
    enc_w1[D_SPEED:, EH:] = cw1.T
    slab[R_ENC:R_ENC + D_SPEED + D_CMD, :2 * EH] = enc_w1

    # fused layer-0 of speed_pred & action_head over [img|speed|cmd]
    slab[R_W0:R_W0 + HID2, :D_FEAT] = np.concatenate([spw0, ahw0], axis=1).T

    # fused final heads: rows 0:4 mean/std (action_pred), row 4 alpha, row 8 pred_speed
    head_w_T = np.concatenate([ap_w.T, al_w.T, np.zeros((3, D_ACT), f32)], axis=0)  # (8, D_ACT)
    head_b = np.concatenate([ap_b, al_b, np.zeros((3,), f32)])                       # (8,)
    final_w = np.zeros((N_OUT, HID2), f32)
    final_w[0:8, HID:HID2] = head_w_T @ ahw1.T        # heads o action_head L1 (fold)
    final_w[8, 0:HID] = spw1[:, 0]                    # speed_pred L1
    final_b = np.zeros((N_OUT,), f32)
    final_b[0:8] = head_w_T @ ahb1 + head_b
    final_b[8] = spb1[0]
    slab[R_FIN:R_FIN + N_OUT, :HID2] = final_w

    rv = R_VEC
    slab[rv:rv + Cout, C_CONV_B] = conv_b
    slab[rv:rv + D_IMG, C_PROJ_B] = proj_b
    slab[rv:rv + EH, C_SW0] = sw0[0, :]
    slab[rv:rv + EH, C_SB0] = sb0
    slab[rv:rv + EH, C_CB0] = cb0
    slab[rv:rv + D_SPEED + D_CMD, C_ENC_B1] = np.concatenate([sb1, cb1])
    slab[rv:rv + HID2, C_B0] = np.concatenate([spb0, ahb0])
    slab[rv:rv + N_OUT, C_FIN_B] = final_b
    slab[rv:rv + EH, C_CW0:C_CW0 + D_CMD_IN] = cw0.T

    cfg = dict(
        KH=KH, KW=KW, CIN=Cin, COUT=Cout, KK=KK, D_IMG=D_IMG, EH=EH,
        D_CMD_IN=D_CMD_IN, D_SPEED=D_SPEED, D_CMD=D_CMD, D_FEAT=D_FEAT,
        HID2=HID2, N_OUT=N_OUT,
        R_CONV=R_CONV, R_PROJ=R_PROJ, R_ENC=R_ENC, R_W0=R_W0, R_FIN=R_FIN,
        R_VEC=R_VEC,
        C_CONV_B=C_CONV_B, C_PROJ_B=C_PROJ_B, C_SW0=C_SW0, C_SB0=C_SB0,
        C_CB0=C_CB0, C_ENC_B1=C_ENC_B1, C_B0=C_B0, C_FIN_B=C_FIN_B, C_CW0=C_CW0,
    )
    return jnp.asarray(slab), cfg


# =============================================================================
# Fused kernel: backbone + encoders + heads, feature-major (out, B) layout
# =============================================================================
def _expert_kernel(patches_ref, sc_ref, slab_ref, out_ref, *, cfg, hw):
    f32 = jnp.float32
    B = out_ref.shape[1]
    Cout, KK, rv = cfg["COUT"], cfg["KK"], cfg["R_VEC"]

    # ---- backbone: 3x3 conv as ONE MXU matmul in (Cout, B*H*W) layout ----
    conv_w = slab_ref[cfg["R_CONV"]:cfg["R_CONV"] + Cout, 0:KK]              # (Cout, KK)
    conv_b = slab_ref[rv:rv + Cout, cfg["C_CONV_B"]:cfg["C_CONV_B"] + 1]     # (Cout, 1)
    conv = jnp.maximum(
        jnp.dot(conv_w, patches_ref[...], preferred_element_type=f32) + conv_b, 0.0)

    # ---- global average pool: per-batch XLU cross-lane reduces (no pool matmul) ----
    lane = lax.broadcasted_iota(jnp.int32, (Cout, B), 1)
    pooled = jnp.zeros((Cout, B), f32)
    for b in range(B):
        piece = jnp.sum(conv[:, b * hw:(b + 1) * hw], axis=1, keepdims=True) * (1.0 / hw)
        pooled = pooled + jnp.where(lane == b, piece, 0.0)                   # (Cout, B)

    # ---- image projection ----
    d_img = cfg["D_IMG"]
    proj_w = slab_ref[cfg["R_PROJ"]:cfg["R_PROJ"] + d_img, 0:Cout]
    proj_b = slab_ref[rv:rv + d_img, cfg["C_PROJ_B"]:cfg["C_PROJ_B"] + 1]
    img_f = jnp.maximum(jnp.dot(proj_w, pooled, preferred_element_type=f32) + proj_b, 0.0)

    # ---- speed encoder layer-0 (K=1): single VPU broadcast FMA ----
    eh = cfg["EH"]
    sw0 = slab_ref[rv:rv + eh, cfg["C_SW0"]:cfg["C_SW0"] + 1]
    sb0 = slab_ref[rv:rv + eh, cfg["C_SB0"]:cfg["C_SB0"] + 1]
    sp_h = jnp.maximum(sw0 * sc_ref[0:1, :] + sb0, 0.0)                      # (EH, B)

    # ---- command encoder layer-0 (K=4): 4 VPU broadcast FMAs (keeps MXU chain short) ----
    cm_h = slab_ref[rv:rv + eh, cfg["C_CB0"]:cfg["C_CB0"] + 1]               # (EH, 1)
    for k in range(cfg["D_CMD_IN"]):
        col = slab_ref[rv:rv + eh, cfg["C_CW0"] + k:cfg["C_CW0"] + k + 1]
        cm_h = cm_h + col * sc_ref[1 + k:2 + k, :]                           # (EH, B)
    cm_h = jnp.maximum(cm_h, 0.0)

    # ---- fused encoder layer-1: block-diag(sw1|cw1), one matmul ----
    d_enc = cfg["D_SPEED"] + cfg["D_CMD"]
    enc_h = jnp.concatenate([sp_h, cm_h], axis=0)                            # (2*EH, B)
    enc_w1 = slab_ref[cfg["R_ENC"]:cfg["R_ENC"] + d_enc, 0:2 * eh]
    enc_b1 = slab_ref[rv:rv + d_enc, cfg["C_ENC_B1"]:cfg["C_ENC_B1"] + 1]
    enc_f = jnp.dot(enc_w1, enc_h, preferred_element_type=f32) + enc_b1      # (D_SPEED+D_CMD, B)

    # ---- fused layer-0 of speed_pred & action_head over features=[img|speed|cmd] ----
    hid2, d_feat = cfg["HID2"], cfg["D_FEAT"]
    feats = jnp.concatenate([img_f, enc_f], axis=0)                          # (D_FEAT, B)
    w0 = slab_ref[cfg["R_W0"]:cfg["R_W0"] + hid2, 0:d_feat]
    b0 = slab_ref[rv:rv + hid2, cfg["C_B0"]:cfg["C_B0"] + 1]
    h0 = jnp.maximum(jnp.dot(w0, feats, preferred_element_type=f32) + b0, 0.0)

    # ---- fused final heads (speed_pred L1 + action_head L1 o {action_pred, alpha}) ----
    n_out = cfg["N_OUT"]
    fw = slab_ref[cfg["R_FIN"]:cfg["R_FIN"] + n_out, 0:hid2]
    fb = slab_ref[rv:rv + n_out, cfg["C_FIN_B"]:cfg["C_FIN_B"] + 1]
    fin = jnp.dot(fw, h0, preferred_element_type=f32) + fb                   # (N_OUT, B)

    # rows: 0:2 mean (raw) | 2:4 std = elu+1 | 4 alpha = relu | 8 pred_speed (raw) | rest 0
    row = lax.broadcasted_iota(jnp.int32, fin.shape, 0)
    elu1 = jnp.where(fin > 0.0, fin, jnp.exp(jnp.minimum(fin, 0.0)) - 1.0) + 1.0
    packed = jnp.where(row < 2, fin,
             jnp.where(row < 4, elu1,
             jnp.where(row == 4, jnp.maximum(fin, 0.0),
             jnp.where(row == 8, fin, 0.0))))
    out_ref[...] = packed.astype(out_ref.dtype)


# =============================================================================
# Forward wrapper: only activation-dependent glue (im2col + concat) per call
# =============================================================================
def make_base_expert_forward(cfg):
    """Returns forward(images, speed, command, slab) -> (alpha, mean, std, pred_speed)."""

    def forward(images, speed, command, slab):
        B, T, C, H, W = images.shape
        Cin = T * C
        KH, KW = cfg["KH"], cfg["KW"]
        assert Cin == cfg["CIN"] and KH * KW * Cin == cfg["KK"]
        assert B <= 128
        HW, N = H * W, B * H * W

        # ---- per-call glue (activation-dependent only): transposed im2col ----
        # TODO(synk): lax.conv_general_dilated_patches could emit this in one XLA op.
        ph, pw = KH // 2, KW // 2
        x = jnp.pad(images.reshape(B, Cin, H, W), ((0, 0), (0, 0), (ph, ph), (pw, pw)))
        xc = jnp.transpose(x, (1, 0, 2, 3))                                  # (Cin, B, H+2p, W+2p)
        taps = [xc[:, :, kh:kh + H, kw:kw + W] for kh in range(KH) for kw in range(KW)]
        patches = jnp.stack(taps, axis=0).reshape(KH * KW * Cin, N)          # (KK, B*H*W) lane-dense
        sc = jnp.concatenate([speed, command], axis=1).T                     # (1+D_CMD_IN, B)

        flops = 2 * (cfg["COUT"] * cfg["KK"] * N
                     + (cfg["D_IMG"] * cfg["COUT"]
                        + (cfg["D_SPEED"] + cfg["D_CMD"]) * 2 * cfg["EH"]
                        + cfg["HID2"] * cfg["D_FEAT"]
                        + cfg["N_OUT"] * cfg["HID2"]) * B)
        bytes_accessed = 4 * (patches.size + sc.size + slab.size + cfg["N_OUT"] * B)

        out = pl.pallas_call(
            functools.partial(_expert_kernel, cfg=cfg, hw=HW),
            out_shape=jax.ShapeDtypeStruct((cfg["N_OUT"], B), jnp.float32),
            grid=(1,),
            in_specs=[pl.BlockSpec(patches.shape, lambda i: (0, 0)),
                      pl.BlockSpec(sc.shape, lambda i: (0, 0)),
                      pl.BlockSpec(slab.shape, lambda i: (0, 0))],
            out_specs=pl.BlockSpec((cfg["N_OUT"], B), lambda i: (0, 0)),
            compiler_params=pltpu.CompilerParams(
                # TODO(synk): on v7x, batch tokens/experts and add a leading
                # "parallel" grid axis so the second TensorCore gets work.
                dimension_semantics=("arbitrary",)),
            cost_estimate=pl.CostEstimate(flops=flops,
                                          transcendentals=cfg["N_OUT"] * B,
                                          bytes_accessed=bytes_accessed),
        )(patches, sc, slab)

        mean = out[0:2, :].T
        std = out[2:4, :].T
        alpha = out[4:5, :].T
        pred_speed = out[8:9, :].T
        return alpha, mean, std, pred_speed

    return forward


# =============================================================================
# Pure-JAX reference of the same synthetic BaseExpert (for correctness check)
# =============================================================================
def _mlp_ref(x, layers):
    for i, (w, b) in enumerate(layers):
        x = x @ w + b
        if i < len(layers) - 1:
            x = jnp.maximum(x, 0.0)
    return x


def reference_forward(images, speed, command, params):
    conv_w, conv_b, proj_w, proj_b = params["backbone"]
    B, T, C, H, W = images.shape
    x = images.reshape(B, T * C, H, W)
    conv = lax.conv_general_dilated(x, conv_w, window_strides=(1, 1), padding="SAME",
                                    dimension_numbers=("NCHW", "HWIO", "NCHW"))
    conv = jnp.maximum(conv + conv_b[None, :, None, None], 0.0)
    img = jnp.maximum(jnp.mean(conv, axis=(2, 3)) @ proj_w + proj_b, 0.0)

    sp = _mlp_ref(speed, params["speed_encoder"])
    cm = _mlp_ref(command, params["command_encoder"])
    feats = jnp.concatenate([img, sp, cm], axis=-1)
    pred_speed = _mlp_ref(feats, params["speed_pred"])
    act_f = _mlp_ref(feats, params["action_head"])
    ap_w, ap_b = params["action_pred"]
    al_w, al_b = params["alpha"]
    ap = act_f @ ap_w + ap_b
    mean, std = ap[:, 0:2], ap[:, 2:4]
    std = jax.nn.elu(std) + 1.0
    alpha = jnp.maximum(act_f @ al_w + al_b, 0.0)
    return alpha, mean, std, pred_speed


# =============================================================================
# Deterministic parameter init (PyTorch-Linear-style uniform)
# =============================================================================
def init_linear(key, din, dout):
    kw, kb = jax.random.split(key)
    s = 1.0 / jnp.sqrt(float(din))
    w = jax.random.uniform(kw, (din, dout), jnp.float32, -s, s)
    b = jax.random.uniform(kb, (dout,), jnp.float32, -s, s)
    return w, b


def init_mlp(key, dims):
    keys = jax.random.split(key, len(dims) - 1)
    return [init_linear(k, dims[i], dims[i + 1]) for i, k in enumerate(keys)]


if __name__ == "__main__":
    B, T, C, H, W = 2, 1, 4, 16, 16
    D_SPEED, D_CMD, D_IMG = 16, 16, 32
    D_FEAT = D_IMG + D_SPEED + D_CMD            # 64
    D_ACT = 32                                  # action_layer_out_features
    CONV_OUT = 8

    key = jax.random.PRNGKey(0)
    ks = jax.random.split(key, 12)

    images = jax.random.normal(ks[0], (B, T, C, H, W), jnp.float32)
    speed = jax.random.normal(ks[1], (B, 1), jnp.float32)
    command = jax.random.normal(ks[2], (B, 4), jnp.float32)

    # backbone conv params
    kcw, kcb = jax.random.split(ks[5])
    s = 1.0 / jnp.sqrt(float(3 * 3 * T * C))
    conv_w = jax.random.uniform(kcw, (3, 3, T * C, CONV_OUT), jnp.float32, -s, s)
    conv_b = jax.random.uniform(kcb, (CONV_OUT,), jnp.float32, -s, s)
    proj_w, proj_b = init_linear(ks[6], CONV_OUT, D_IMG)

    params = {
        "speed_encoder": init_mlp(ks[3], [1, 16, D_SPEED]),
        "command_encoder": init_mlp(ks[4], [4, 16, D_CMD]),
        "backbone": (conv_w, conv_b, proj_w, proj_b),
        "speed_pred": init_mlp(ks[7], [D_FEAT, 32, 1]),
        "action_head": init_mlp(ks[8], [D_FEAT, 32, D_ACT]),
        "alpha": init_linear(ks[9], D_ACT, 1),
        "action_pred": init_linear(ks[10], D_ACT, 4),
    }

    # One-time parameter packing (hoisted out of the forward path).
    slab, cfg = prepare_params(params)
    fwd = jax.jit(make_base_expert_forward(cfg))

    alpha, mean, std, pred_speed = fwd(images, speed, command, slab)
    jax.block_until_ready((alpha, mean, std, pred_speed))

    # Validate the fused / folded kernel against a plain-JAX reference.
    with jax.default_matmul_precision("highest"):
        ra, rm, rs, rp = reference_forward(images, speed, command, params)
    np.testing.assert_allclose(np.asarray(alpha), np.asarray(ra), rtol=1e-2, atol=1e-3)
    np.testing.assert_allclose(np.asarray(mean), np.asarray(rm), rtol=1e-2, atol=1e-3)
    np.testing.assert_allclose(np.asarray(std), np.asarray(rs), rtol=1e-2, atol=1e-3)
    np.testing.assert_allclose(np.asarray(pred_speed), np.asarray(rp), rtol=1e-2, atol=1e-3)

    assert alpha.shape == (B, 1)
    assert mean.shape == (B, 2)
    assert std.shape == (B, 2)
    assert pred_speed.shape == (B, 1)
    print("KERNEL_OK")
</pallas_src>

<mosaic_0001>
module attributes {stable_mosaic.version = 11 : i64} {
  func.func @_expert_kernel(%arg0: i32, %arg1: memref<36x512xf32, #tpu.memory_space<vmem>>, %arg2: memref<5x2xf32, #tpu.memory_space<vmem>>, %arg3: memref<216x128xf32, #tpu.memory_space<vmem>>, %arg4: memref<16x2xf32, #tpu.memory_space<vmem>>) attributes {dimension_semantics = [#tpu.dimension_semantics<arbitrary>], iteration_bounds = array<i64: 1>, scalar_prefetch = 0 : i64, scratch_operands = 0 : i64, tpu.core_type = #tpu.core_type<tc>, window_params = [{pipeline_mode = #tpu.pipeline_mode<synchronous>, transform_indices = @transform_0, window_bounds = array<i64: 36, 512>}, {pipeline_mode = #tpu.pipeline_mode<synchronous>, transform_indices = @transform_1, window_bounds = array<i64: 5, 2>}, {pipeline_mode = #tpu.pipeline_mode<synchronous>, transform_indices = @transform_2, window_bounds = array<i64: 216, 128>}, {pipeline_mode = #tpu.pipeline_mode<synchronous>, transform_indices = @transform_3, window_bounds = array<i64: 16, 2>}]} {
    %c0 = arith.constant 0 : index
    %c0_0 = arith.constant 0 : index
    %0 = vector.load %arg3[%c0, %c0_0] : memref<216x128xf32, #tpu.memory_space<vmem>>, vector<8x36xf32>
    %c152 = arith.constant 152 : index
    %c0_1 = arith.constant 0 : index
    %1 = vector.load %arg3[%c152, %c0_1] : memref<216x128xf32, #tpu.memory_space<vmem>>, vector<8x1xf32>
    %c0_2 = arith.constant 0 : index
    %c0_3 = arith.constant 0 : index
    %2 = vector.load %arg1[%c0_2, %c0_3] : memref<36x512xf32, #tpu.memory_space<vmem>>, vector<36x512xf32>
    %cst = arith.constant dense<0.000000e+00> : vector<8x512xf32>
    %3 = tpu.matmul %0, %2, %cst {dimension_numbers = #tpu.dot_dimension_numbers<[1], [0], [0], [1], [0, 0, 1, 1], [], []>} : vector<8x36xf32>, vector<36x512xf32>, vector<8x512xf32> -> vector<8x512xf32>
    %4 = vector.broadcast %1 : vector<8x1xf32> to vector<8x512xf32>
    %5 = arith.addf %3, %4 : vector<8x512xf32>
    %cst_4 = arith.constant 0.000000e+00 : f32
    %6 = vector.broadcast %cst_4 : f32 to vector<8x512xf32>
    %7 = arith.maximumf %5, %6 : vector<8x512xf32>
    %8 = tpu.iota {dimensions = array<i32: 1>} : vector<8x2xi32>
    %cst_5 = arith.constant 0.000000e+00 : f32
    %9 = vector.broadcast %cst_5 : f32 to vector<8x2xf32>
    %10 = vector.extract_strided_slice %7 {offsets = [0, 0], sizes = [8, 256], strides = [1, 1]} : vector<8x512xf32> to vector<8x256xf32>
    %cst_6 = arith.constant dense<0.000000e+00> : vector<8xf32>
    %11 = vector.multi_reduction <add>, %10, %cst_6 [1] : vector<8x256xf32> to vector<8xf32>
    %12 = vector.shape_cast %11 : vector<8xf32> to vector<8x1xf32>
    %cst_7 = arith.constant 3.906250e-03 : f32
    %13 = vector.broadcast %cst_7 : f32 to vector<8x1xf32>
    %14 = arith.mulf %12, %13 : vector<8x1xf32>
    %c0_i32 = arith.constant 0 : i32
    %15 = vector.broadcast %c0_i32 : i32 to vector<8x2xi32>
    %16 = arith.cmpi eq, %8, %15 : vector<8x2xi32>
    %cst_8 = arith.constant 0.000000e+00 : f32
    %17 = vector.shape_cast %14 : vector<8x1xf32> to vector<8x1xf32>
    %18 = vector.broadcast %17 : vector<8x1xf32> to vector<8x2xf32>
    %19 = vector.broadcast %cst_8 : f32 to vector<8x2xf32>
    %20 = arith.select %16, %18, %19 : vector<8x2xi1>, vector<8x2xf32>
    %21 = arith.addf %9, %20 : vector<8x2xf32>
    %22 = vector.extract_strided_slice %7 {offsets = [0, 256], sizes = [8, 256], strides = [1, 1]} : vector<8x512xf32> to vector<8x256xf32>
    %cst_9 = arith.constant dense<0.000000e+00> : vector<8xf32>
    %23 = vector.multi_reduction <add>, %22, %cst_9 [1] : vector<8x256xf32> to vector<8xf32>
    %24 = vector.shape_cast %23 : vector<8xf32> to vector<8x1xf32>
    %cst_10 = arith.constant 3.906250e-03 : f32
    %25 = vector.broadcast %cst_10 : f32 to vector<8x1xf32>
    %26 = arith.mulf %24, %25 : vector<8x1xf32>
    %c1_i32 = arith.constant 1 : i32
    %27 = vector.broadcast %c1_i32 : i32 to vector<8x2xi32>
    %28 = arith.cmpi eq, %8, %27 : vector<8x2xi32>
    %cst_11 = arith.constant 0.000000e+00 : f32
    %29 = vector.shape_cast %26 : vector<8x1xf32> to vector<8x1xf32>
    %30 = vector.broadcast %29 : vector<8x1xf32> to vector<8x2xf32>
    %31 = vector.broadcast %cst_11 : f32 to vector<8x2xf32>
    %32 = arith.select %28, %30, %31 : vector<8x2xi1>, vector<8x2xf32>
    %33 = arith.addf %21, %32 : vector<8x2xf32>
    %c8 = arith.constant 8 : index
    %c0_12 = arith.constant 0 : index
    %34 = vector.load %arg3[%c8, %c0_12] : memref<216x128xf32, #tpu.memory_space<vmem>>, vector<32x8xf32>
    %c152_13 = arith.constant 152 : index
    %c1 = arith.constant 1 : index
    %35 = vector.load %arg3[%c152_13, %c1] : memref<216x128xf32, #tpu.memory_space<vmem>>, vector<32x1xf32>
    %cst_14 = arith.constant dense<0.000000e+00> : vector<32x2xf32>
    %36 = tpu.matmul %34, %33, %cst_14 {dimension_numbers = #tpu.dot_dimension_numbers<[1], [0], [0], [1], [0, 0, 1, 1], [], []>} : vector<32x8xf32>, vector<8x2xf32>, vector<32x2xf32> -> vector<32x2xf32>
    %37 = vector.broadcast %35 : vector<32x1xf32> to vector<32x2xf32>
    %38 = arith.addf %36, %37 : vector<32x2xf32>
    %cst_15 = arith.constant 0.000000e+00 : f32
    %39 = vector.broadcast %cst_15 : f32 to vector<32x2xf32>
    %40 = arith.maximumf %38, %39 : vector<32x2xf32>
    %c152_16 = arith.constant 152 : index
    %c2 = arith.constant 2 : index
    %41 = vector.load %arg3[%c152_16, %c2] : memref<216x128xf32, #tpu.memory_space<vmem>>, vector<16x1xf32>
    %c152_17 = arith.constant 152 : index
    %c3 = arith.constant 3 : index
    %42 = vector.load %arg3[%c152_17, %c3] : memref<216x128xf32, #tpu.memory_space<vmem>>, vector<16x1xf32>
    %c0_18 = arith.constant 0 : index
    %c0_19 = arith.constant 0 : index
    %43 = vector.load %arg2[%c0_18, %c0_19] : memref<5x2xf32, #tpu.memory_space<vmem>>, vector<1x2xf32>
    %44 = vector.broadcast %41 : vector<16x1xf32> to vector<16x2xf32>
    %45 = vector.broadcast %43 : vector<1x2xf32> to vector<16x2xf32>
    %46 = arith.mulf %44, %45 : vector<16x2xf32>
    %47 = vector.broadcast %42 : vector<16x1xf32> to vector<16x2xf32>
    %48 = arith.addf %46, %47 : vector<16x2xf32>
    %cst_20 = arith.constant 0.000000e+00 : f32
    %49 = vector.broadcast %cst_20 : f32 to vector<16x2xf32>
    %50 = arith.maximumf %48, %49 : vector<16x2xf32>
    %c152_21 = arith.constant 152 : index
    %c4 = arith.constant 4 : index
    %51 = vector.load %arg3[%c152_21, %c4] : memref<216x128xf32, #tpu.memory_space<vmem>>, vector<16x1xf32>
    %c152_22 = arith.constant 152 : index
    %c8_23 = arith.constant 8 : index
    %52 = vector.load %arg3[%c152_22, %c8_23] : memref<216x128xf32, #tpu.memory_space<vmem>>, vector<16x1xf32>
    %c1_24 = arith.constant 1 : index
    %c0_25 = arith.constant 0 : index
    %53 = vector.load %arg2[%c1_24, %c0_25] : memref<5x2xf32, #tpu.memory_space<vmem>>, vector<1x2xf32>
    %54 = vector.broadcast %52 : vector<16x1xf32> to vector<16x2xf32>
    %55 = vector.broadcast %53 : vector<1x2xf32> to vector<16x2xf32>
    %56 = arith.mulf %54, %55 : vector<16x2xf32>
    %57 = vector.broadcast %51 : vector<16x1xf32> to vector<16x2xf32>
    %58 = arith.addf %57, %56 : vector<16x2xf32>
    %c152_26 = arith.constant 152 : index
    %c9 = arith.constant 9 : index
    %59 = vector.load %arg3[%c152_26, %c9] : memref<216x128xf32, #tpu.memory_space<vmem>>, vector<16x1xf32>
    %c2_27 = arith.constant 2 : index
    %c0_28 = arith.constant 0 : index
    %60 = vector.load %arg2[%c2_27, %c0_28] : memref<5x2xf32, #tpu.memory_space<vmem>>, vector<1x2xf32>
    %61 = vector.broadcast %59 : vector<16x1xf32> to vector<16x2xf32>
    %62 = vector.broadcast %60 : vector<1x2xf32> to vector<16x2xf32>
    %63 = arith.mulf %61, %62 : vector<16x2xf32>
    %64 = arith.addf %58, %63 : vector<16x2xf32>
    %c152_29 = arith.constant 152 : index
    %c10 = arith.constant 10 : index
    %65 = vector.load %arg3[%c152_29, %c10] : memref<216x128xf32, #tpu.memory_space<vmem>>, vector<16x1xf32>
    %c3_30 = arith.constant 3 : index
    %c0_31 = arith.constant 0 : index
    %66 = vector.load %arg2[%c3_30, %c0_31] : memref<5x2xf32, #tpu.memory_space<vmem>>, vector<1x2xf32>
    %67 = vector.broadcast %65 : vector<16x1xf32> to vector<16x2xf32>
    %68 = vector.broadcast %66 : vector<1x2xf32> to vector<16x2xf32>
    %69 = arith.mulf %67, %68 : vector<16x2xf32>
    %70 = arith.addf %64, %69 : vector<16x2xf32>
    %c152_32 = arith.constant 152 : index
    %c11 = arith.constant 11 : index
    %71 = vector.load %arg3[%c152_32, %c11] : memref<216x128xf32, #tpu.memory_space<vmem>>, vector<16x1xf32>
    %c4_33 = arith.constant 4 : index
    %c0_34 = arith.constant 0 : index
    %72 = vector.load %arg2[%c4_33, %c0_34] : memref<5x2xf32, #tpu.memory_space<vmem>>, vector<1x2xf32>
    %73 = vector.broadcast %71 : vector<16x1xf32> to vector<16x2xf32>
    %74 = vector.broadcast %72 : vector<1x2xf32> to vector<16x2xf32>
    %75 = arith.mulf %73, %74 : vector<16x2xf32>
    %76 = arith.addf %70, %75 : vector<16x2xf32>
    %cst_35 = arith.constant 0.000000e+00 : f32
    %77 = vector.broadcast %cst_35 : f32 to vector<16x2xf32>
    %78 = arith.maximumf %76, %77 : vector<16x2xf32>
    %79 = tpu.concatenate %50, %78 in 0 : vector<16x2xf32>, vector<16x2xf32> -> vector<32x2xf32>
    %c40 = arith.constant 40 : index
    %c0_36 = arith.constant 0 : index
    %80 = vector.load %arg3[%c40, %c0_36] : memref<216x128xf32, #tpu.memory_space<vmem>>, vector<32x32xf32>
    %c152_37 = arith.constant 152 : index
    %c5 = arith.constant 5 : index
    %81 = vector.load %arg3[%c152_37, %c5] : memref<216x128xf32, #tpu.memory_space<vmem>>, vector<32x1xf32>
    %cst_38 = arith.constant dense<0.000000e+00> : vector<32x2xf32>
    %82 = tpu.matmul %80, %79, %cst_38 {dimension_numbers = #tpu.dot_dimension_numbers<[1], [0], [0], [1], [0, 0, 1, 1], [], []>} : vector<32x32xf32>, vector<32x2xf32>, vector<32x2xf32> -> vector<32x2xf32>
    %83 = vector.broadcast %81 : vector<32x1xf32> to vector<32x2xf32>
    %84 = arith.addf %82, %83 : vector<32x2xf32>
    %85 = tpu.concatenate %40, %84 in 0 : vector<32x2xf32>, vector<32x2xf32> -> vector<64x2xf32>
    %c72 = arith.constant 72 : index
    %c0_39 = arith.constant 0 : index
    %86 = vector.load %arg3[%c72, %c0_39] : memref<216x128xf32, #tpu.memory_space<vmem>>, vector<64x64xf32>
    %c152_40 = arith.constant 152 : index
    %c6 = arith.constant 6 : index
    %87 = vector.load %arg3[%c152_40, %c6] : memref<216x128xf32, #tpu.memory_space<vmem>>, vector<64x1xf32>
    %cst_41 = arith.constant dense<0.000000e+00> : vector<64x2xf32>
    %88 = tpu.matmul %86, %85, %cst_41 {dimension_numbers = #tpu.dot_dimension_numbers<[1], [0], [0], [1], [0, 0, 1, 1], [], []>} : vector<64x64xf32>, vector<64x2xf32>, vector<64x2xf32> -> vector<64x2xf32>
    %89 = vector.broadcast %87 : vector<64x1xf32> to vector<64x2xf32>
    %90 = arith.addf %88, %89 : vector<64x2xf32>
    %cst_42 = arith.constant 0.000000e+00 : f32
    %91 = vector.broadcast %cst_42 : f32 to vector<64x2xf32>
    %92 = arith.maximumf %90, %91 : vector<64x2xf32>
    %c136 = arith.constant 136 : index
    %c0_43 = arith.constant 0 : index
    %93 = vector.load %arg3[%c136, %c0_43] : memref<216x128xf32, #tpu.memory_space<vmem>>, vector<16x64xf32>
    %c152_44 = arith.constant 152 : index
    %c7 = arith.constant 7 : index
    %94 = vector.load %arg3[%c152_44, %c7] : memref<216x128xf32, #tpu.memory_space<vmem>>, vector<16x1xf32>
    %cst_45 = arith.constant dense<0.000000e+00> : vector<16x2xf32>
    %95 = tpu.matmul %93, %92, %cst_45 {dimension_numbers = #tpu.dot_dimension_numbers<[1], [0], [0], [1], [0, 0, 1, 1], [], []>} : vector<16x64xf32>, vector<64x2xf32>, vector<16x2xf32> -> vector<16x2xf32>
    %96 = vector.broadcast %94 : vector<16x1xf32> to vector<16x2xf32>
    %97 = arith.addf %95, %96 : vector<16x2xf32>
    %98 = tpu.iota {dimensions = array<i32: 0>} : vector<16x2xi32>
    %cst_46 = arith.constant 0.000000e+00 : f32
    %99 = vector.broadcast %cst_46 : f32 to vector<16x2xf32>
    %100 = arith.cmpf ogt, %97, %99 : vector<16x2xf32>
    %cst_47 = arith.constant 0.000000e+00 : f32
    %101 = vector.broadcast %cst_47 : f32 to vector<16x2xf32>
    %102 = arith.minimumf %97, %101 : vector<16x2xf32>
    %103 = math.exp %102 : vector<16x2xf32>
    %cst_48 = arith.constant 1.000000e+00 : f32
    %104 = vector.broadcast %cst_48 : f32 to vector<16x2xf32>
    %105 = arith.subf %103, %104 : vector<16x2xf32>
    %106 = arith.select %100, %97, %105 : vector<16x2xi1>, vector<16x2xf32>
    %cst_49 = arith.constant 1.000000e+00 : f32
    %107 = vector.broadcast %cst_49 : f32 to vector<16x2xf32>
    %108 = arith.addf %106, %107 : vector<16x2xf32>
    %c2_i32 = arith.constant 2 : i32
    %109 = vector.broadcast %c2_i32 : i32 to vector<16x2xi32>
    %110 = arith.cmpi slt, %98, %109 : vector<16x2xi32>
    %c4_i32 = arith.constant 4 : i32
    %111 = vector.broadcast %c4_i32 : i32 to vector<16x2xi32>
    %112 = arith.cmpi slt, %98, %111 : vector<16x2xi32>
    %c4_i32_50 = arith.constant 4 : i32
    %113 = vector.broadcast %c4_i32_50 : i32 to vector<16x2xi32>
    %114 = arith.cmpi eq, %98, %113 : vector<16x2xi32>
    %cst_51 = arith.constant 0.000000e+00 : f32
    %115 = vector.broadcast %cst_51 : f32 to vector<16x2xf32>
    %116 = arith.maximumf %97, %115 : vector<16x2xf32>
    %c8_i32 = arith.constant 8 : i32
    %117 = vector.broadcast %c8_i32 : i32 to vector<16x2xi32>
    %118 = arith.cmpi eq, %98, %117 : vector<16x2xi32>
    %cst_52 = arith.constant 0.000000e+00 : f32
    %119 = vector.broadcast %cst_52 : f32 to vector<16x2xf32>
    %120 = arith.select %118, %97, %119 : vector<16x2xi1>, vector<16x2xf32>
    %121 = arith.select %114, %116, %120 : vector<16x2xi1>, vector<16x2xf32>
    %122 = arith.select %112, %108, %121 : vector<16x2xi1>, vector<16x2xf32>
    %123 = arith.select %110, %97, %122 : vector<16x2xi1>, vector<16x2xf32>
    %c0_53 = arith.constant 0 : index
    %c0_54 = arith.constant 0 : index
    %124 = vector.load %arg4[%c0_53, %c0_54] : memref<16x2xf32, #tpu.memory_space<vmem>>, vector<16x2xf32>
    tpu.vector_store %arg4[%c0_53, %c0_54], %123 {strides = array<i32>} : memref<16x2xf32, #tpu.memory_space<vmem>>, vector<16x2xf32>,
    return
  }
  func.func @transform_0(%arg0: i32) -> (i32, i32) {
    %c0_i32 = arith.constant 0 : i32
    %c0_i32_0 = arith.constant 0 : i32
    %c0_i32_1 = arith.constant 0 : i32
    return %c0_i32, %c0_i32_0 : i32, i32
  }
  func.func @transform_1(%arg0: i32) -> (i32, i32) {
    %c0_i32 = arith.constant 0 : i32
    %c0_i32_0 = arith.constant 0 : i32
    %c0_i32_1 = arith.constant 0 : i32
    return %c0_i32, %c0_i32_0 : i32, i32
  }
  func.func @transform_2(%arg0: i32) -> (i32, i32) {
    %c0_i32 = arith.constant 0 : i32
    %c0_i32_0 = arith.constant 0 : i32
    %c0_i32_1 = arith.constant 0 : i32
    return %c0_i32, %c0_i32_0 : i32, i32
  }
  func.func @transform_3(%arg0: i32) -> (i32, i32) {
    %c0_i32 = arith.constant 0 : i32
    %c0_i32_0 = arith.constant 0 : i32
    %c0_i32_1 = arith.constant 0 : i32
    return %c0_i32, %c0_i32_0 : i32, i32
  }
}

</mosaic_0001>

<llo_original>
// kernel: forward.1
$region0: #{forward.1}
  #allocation0 [shape = 'u32[]', space=smem, size = 0x4, offset = 0x4, fixed_abs, tag = 'smem constant byte address 0x4 - core index']
  #allocation1 [shape = 'u32[144,128]{1,0:T(1,128)}', space=vmem, size = 0x12000, scoped, tag = 'internal scratch']
  %s0 = inlined_call_operand.vmem [shape: f32[36,512], index: 0, kind: input, shape index: {}]
  %s1 = inlined_call_operand.vmem [shape: f32[5,2], index: 1, kind: input, shape index: {}]
  %s2 = inlined_call_operand.vmem [shape: f32[216,128], index: 2, kind: input, shape index: {}]
  %s3 = inlined_call_operand.vmem [shape: f32[16,2], index: 3, kind: output, shape index: {}]
  %s4 = sld [smem:[#allocation0]]
  $region22: #{forward.1} parent=0
    _
  %s6 = ssub.s32 1, %s4
  %s7 = scalar_select 0, %s6, %s4
  // Predicated region
  $region2: #{forward.1} parent=0 // pred_check
    _
  $region3: #{forward.1} parent=0 // pred_check_branch
    %9 = sbr.rel (0) target = $region5
  $region4: #{forward.1} parent=0 // pred_region
    _
  $region5: #{forward.1} parent=0 // pred_fallthru
    _
  // Predicated region
  $region6: #{forward.1} parent=0 // pred_check
    _
  $region7: #{forward.1} parent=0 // pred_check_branch
    %11 = sbr.rel (0) target = $region9
  $region8: #{forward.1} parent=0 // pred_region
    _
  $region9: #{forward.1} parent=0 // pred_fallthru
    _
  // Predicated region
  $region10: #{forward.1} parent=0 // pred_check
    _
  $region11: #{forward.1} parent=0 // pred_check_branch
    %13 = sbr.rel (0) target = $region13
  $region12: #{forward.1} parent=0 // pred_region
    _
  $region13: #{forward.1} parent=0 // pred_fallthru
    _
  %v14 = vld [vmem:[%s2] sm:$0xff]
  %v15 = vld [vmem:[%s2 + $0x98] sm:$0xff]
  %v16 = vld [vmem:[%s0] sm:$0xff]
  %v17 = vld [vmem:[%s0 + $0x8] sm:$0xff]
  %v18 = vld [vmem:[%s0 + $0x10] sm:$0xff]
  %v19 = vld [vmem:[%s0 + $0x18] sm:$0xff]
  %v20 = vld [vmem:[%s0 + $0x20] sm:$0xff]
  %v21 = vld [vmem:[%s0 + $0x28] sm:$0xff]
  %v22 = vld [vmem:[%s0 + $0x30] sm:$0xff]
  %v23 = vld [vmem:[%s0 + $0x38] sm:$0xff]
  %v24 = vld [vmem:[%s0 + $0x40] sm:$0xff]
  %v25 = vld [vmem:[%s0 + $0x48] sm:$0xff]
  %v26 = vld [vmem:[%s0 + $0x50] sm:$0xff]
  %v27 = vld [vmem:[%s0 + $0x58] sm:$0xff]
  %v28 = vld [vmem:[%s0 + $0x60] sm:$0xff]
  %v29 = vld [vmem:[%s0 + $0x68] sm:$0xff]
  %v30 = vld [vmem:[%s0 + $0x70] sm:$0xff]
  %v31 = vld [vmem:[%s0 + $0x78] sm:$0xff]
  %v32 = vld [vmem:[%s0 + $0x80] sm:$0xf]
  %v33 = vld [vmem:[%s0 + $0x88] sm:$0xf]
  %v34 = vld [vmem:[%s0 + $0x90] sm:$0xf]
  %v35 = vld [vmem:[%s0 + $0x98] sm:$0xf]
  %37 = vset.pattern.permute.xlu0 0
  %38 = vperm.xlu0 %37, %v15
  %v39 = vpop.permute.xlu0 %38
  %vm41 = vcmask 293888
  %v43 = vsel %vm41, %v14, 0
  %vm45 = vcmask 1043456
  %v47 = vsel %vm45, %v32, 0
  %v50 = vsel %vm45, %v33, 0
  %v53 = vsel %vm45, %v34, 0
  %v56 = vsel %vm45, %v35, 0
  %58 = vmatprep.subr.mxu0 0.0
  %59 = vmatpush1.msra.mxu0 0.0
  %60 = vmatprep.subr.mxu0 0.0
  %61 = vmatpush1.msra.mxu0 0.0
  %62 = vmatprep.subr.mxu0 0.0
  %63 = vmatpush1.msra.mxu0 0.0
  %64 = vmatprep.subr.mxu0 0.0
  %65 = vmatpush1.msra.mxu0 0.0
  %66 = vmatprep.subr.mxu0 0.0
  %67 = vmatpush1.msra.mxu0 0.0
  %68 = vmatprep.subr.mxu0 0.0
  %69 = vmatpush1.msra.mxu0 0.0
  %70 = vmatprep.subr.mxu0 0.0
  %71 = vmatpush1.msra.mxu0 0.0
  %72 = vmatprep.subr.mxu0 0.0
  %73 = vmatpush1.msra.mxu0 0.0
  %74 = vmatprep.subr.mxu0 0.0
  %75 = vmatpush1.msra.mxu0 0.0
  %76 = vmatprep.subr.mxu0 0.0
  %77 = vmatpush1.msra.mxu0 0.0
  %78 = vmatprep.subr.mxu0 0.0
  %79 = vmatpush1.msra.mxu0 0.0
  %80 = vmatprep.subr.mxu0 %v50
  %81 = vmatpush1.msra.mxu0 %v47
  %82 = vmatprep.subr.mxu0 %v29
  %83 = vmatpush1.msra.mxu0 %v28
  %84 = vmatprep.subr.mxu0 %v25
  %85 = vmatpush1.msra.mxu0 %v24
  %86 = vmatprep.subr.mxu0 %v21
  %87 = vmatpush1.msra.mxu0 %v20
  %88 = vmatprep.subr.mxu0 %v17
  %89 = vmatpush1.msra.mxu0 %v16
  %90 = vmatprep.subr.mxu0 0.0
  %91 = vmatpush2.msra.mxu0 0.0
  %92 = vmatprep.subr.mxu0 0.0
  %93 = vmatpush2.msra.mxu0 0.0
  %94 = vmatprep.subr.mxu0 0.0
  %95 = vmatpush2.msra.mxu0 0.0
  %96 = vmatprep.subr.mxu0 0.0
  %97 = vmatpush2.msra.mxu0 0.0
  %98 = vmatprep.subr.mxu0 0.0
  %99 = vmatpush2.msra.mxu0 0.0
  %100 = vmatprep.subr.mxu0 0.0
  %101 = vmatpush2.msra.mxu0 0.0
  %102 = vmatprep.subr.mxu0 0.0
  %103 = vmatpush2.msra.mxu0 0.0
  %104 = vmatprep.subr.mxu0 0.0
  %105 = vmatpush2.msra.mxu0 0.0
  %106 = vmatprep.subr.mxu0 0.0
  %107 = vmatpush2.msra.mxu0 0.0
  %108 = vmatprep.subr.mxu0 0.0
  %109 = vmatpush2.msra.mxu0 0.0
  %110 = vmatprep.subr.mxu0 0.0
  %111 = vmatpush2.msra.mxu0 0.0
  %112 = vmatprep.subr.mxu0 0.0
  %113 = vmatpush2.msra.mxu0 0.0
  %114 = vmatprep.subr.mxu0 0.0
  %115 = vmatpush2.msra.mxu0 0.0
  %116 = vmatprep.subr.mxu0 0.0
  %117 = vmatpush2.msra.mxu0 0.0
  %118 = vmatprep.subr.mxu0 0.0
  %119 = vmatpush2.msra.mxu0 0.0
  %120 = vmatprep.subr.mxu0 0.0
  %121 = vmatpush2.msra.mxu0 0.0
  %122 = vmatprep.mubr.f32.mxu0 0.0
  %123 = vmatmul.mubr.f32.gmra.mxu0 %v43
  %v124 = vpop.f32.mrf.mxu0
  %v125 = vadd.f32 %v39, %v124
  %v126 = vpop.f32.mrf.mxu0
  %v127 = vadd.f32 %v39, %v126
  %128 = vdwg.mxu0
  %129 = vmatprep.subr.mxu0 0.0
  %130 = vmatpush1.msra.mxu0 0.0
  %131 = vmatprep.subr.mxu0 0.0
  %132 = vmatpush1.msra.mxu0 0.0
  %133 = vmatprep.subr.mxu0 0.0
  %134 = vmatpush1.msra.mxu0 0.0
  %135 = vmatprep.subr.mxu0 0.0
  %136 = vmatpush1.msra.mxu0 0.0
  %137 = vmatprep.subr.mxu0 0.0
  %138 = vmatpush1.msra.mxu0 0.0
  %139 = vmatprep.subr.mxu0 0.0
  %140 = vmatpush1.msra.mxu0 0.0
  %141 = vmatprep.subr.mxu0 0.0
  %142 = vmatpush1.msra.mxu0 0.0
  %143 = vmatprep.subr.mxu0 0.0
  %144 = vmatpush1.msra.mxu0 0.0
  %145 = vmatprep.subr.mxu0 0.0
  %146 = vmatpush1.msra.mxu0 0.0
  %147 = vmatprep.subr.mxu0 0.0
  %148 = vmatpush1.msra.mxu0 0.0
  %149 = vmatprep.subr.mxu0 0.0
  %150 = vmatpush1.msra.mxu0 0.0
  %151 = vmatprep.subr.mxu0 %v56
  %152 = vmatpush1.msra.mxu0 %v53
  %153 = vmatprep.subr.mxu0 %v31
  %154 = vmatpush1.msra.mxu0 %v30
  %155 = vmatprep.subr.mxu0 %v27
  %156 = vmatpush1.msra.mxu0 %v26
  %157 = vmatprep.subr.mxu0 %v23
  %158 = vmatpush1.msra.mxu0 %v22
  %159 = vmatprep.subr.mxu0 %v19
  %160 = vmatpush1.msra.mxu0 %v18
  %161 = vmatprep.subr.mxu0 0.0
  %162 = vmatpush2.msra.mxu0 0.0
  %163 = vmatprep.subr.mxu0 0.0
  %164 = vmatpush2.msra.mxu0 0.0
  %165 = vmatprep.subr.mxu0 0.0
  %166 = vmatpush2.msra.mxu0 0.0
  %167 = vmatprep.subr.mxu0 0.0
  %168 = vmatpush2.msra.mxu0 0.0
  %169 = vmatprep.subr.mxu0 0.0
  %170 = vmatpush2.msra.mxu0 0.0
  %171 = vmatprep.subr.mxu0 0.0
  %172 = vmatpush2.msra.mxu0 0.0
  %173 = vmatprep.subr.mxu0 0.0
  %174 = vmatpush2.msra.mxu0 0.0
  %175 = vmatprep.subr.mxu0 0.0
  %176 = vmatpush2.msra.mxu0 0.0
  %177 = vmatprep.subr.mxu0 0.0
  %178 = vmatpush2.msra.mxu0 0.0
  %179 = vmatprep.subr.mxu0 0.0
  %180 = vmatpush2.msra.mxu0 0.0
  %181 = vmatprep.subr.mxu0 0.0
  %182 = vmatpush2.msra.mxu0 0.0
  %183 = vmatprep.subr.mxu0 0.0
  %184 = vmatpush2.msra.mxu0 0.0
  %185 = vmatprep.subr.mxu0 0.0
  %186 = vmatpush2.msra.mxu0 0.0
  %187 = vmatprep.subr.mxu0 0.0
  %188 = vmatpush2.msra.mxu0 0.0
  %189 = vmatprep.subr.mxu0 0.0
  %190 = vmatpush2.msra.mxu0 0.0
  %191 = vmatprep.subr.mxu0 0.0
  %192 = vmatpush2.msra.mxu0 0.0
  %193 = vmatprep.mubr.f32.mxu0 0.0
  %194 = vmatmul.mubr.f32.gmra.mxu0 %v43
  %v195 = vpop.f32.mrf.mxu0
  %v196 = vadd.f32 %v39, %v195
  %v197 = vpop.f32.mrf.mxu0
  %v198 = vadd.f32 %v39, %v197
  %199 = vdwg.mxu0
  %v200 = vmax.f32 %v125, 0.0
  %v201 = vmax.f32 %v127, 0.0
  %v202 = vmax.f32 %v196, 0.0
  %v203 = vmax.f32 %v198, 0.0
  %v204 = vlaneseq
  %v205 = vand.u32 %v204, 127
  %v206 = vadd.f32 %v200, %v201
  %207 = vadd.xlane.f32.xlu0 %v206
  %v208 = vpop.xlane.xlu0 %207
  %v209 = vmul.f32 %v208, 0.00390625
  %vm210 = vcmp.eq.s32.totalorder %v205, 0
  %v211 = vsel %vm210, %v209, 0.0
  %v212 = vadd.f32 %v211, 0.0
  %v213 = vadd.f32 %v202, %v203
  %214 = vadd.xlane.f32.xlu0 %v213
  %v215 = vpop.xlane.xlu0 %214
  %v216 = vmul.f32 %v215, 0.00390625
  %vm217 = vcmp.eq.s32.totalorder %v205, 1
  %v218 = vsel %vm217, %v216, 0.0
  %v219 = vadd.f32 %v212, %v218
  %v220 = vld [vmem:[%s2 + $0x8] sm:$0xff]
  %v221 = vld [vmem:[%s2 + $0x10] sm:$0xff]
  %v222 = vld [vmem:[%s2 + $0x18] sm:$0xff]
  %v223 = vld [vmem:[%s2 + $0x20] sm:$0xff]
  %v224 = vld [vmem:[%s2 + $0x98] sm:$0xff]
  %v225 = vld [vmem:[%s2 + $0xa0] sm:$0xff]
  %v226 = vld [vmem:[%s2 + $0xa8] sm:$0xff]
  %v227 = vld [vmem:[%s2 + $0xb0] sm:$0xff]
  %229 = vset.pattern.permute.xlu0 1
  %230 = vperm.xlu0 %229, %v224
  %v231 = vpop.permute.xlu0 %230
  %234 = vset.pattern.permute.xlu0 1
  %235 = vperm.xlu0 %234, %v225
  %v236 = vpop.permute.xlu0 %235
  %239 = vset.pattern.permute.xlu0 1
  %240 = vperm.xlu0 %239, %v226
  %v241 = vpop.permute.xlu0 %240
  %244 = vset.pattern.permute.xlu0 1
  %245 = vperm.xlu0 %244, %v227
  %v246 = vpop.permute.xlu0 %245
  %vm248 = vcmask 64512
  %v250 = vsel %vm248, %v220, 0
  %v253 = vsel %vm248, %v221, 0
  %v256 = vsel %vm248, %v222, 0
  %v259 = vsel %vm248, %v223, 0
  %261 = vmatprep.subr.mxu0 0.0
  %262 = vmatpush1.msra.mxu0 0.0
  %263 = vmatprep.subr.mxu0 0.0
  %264 = vmatpush1.msra.mxu0 0.0
  %265 = vmatprep.subr.mxu0 0.0
  %266 = vmatpush1.msra.mxu0 0.0
  %267 = vmatprep.subr.mxu0 0.0
  %268 = vmatpush1.msra.mxu0 0.0
  %269 = vmatprep.subr.mxu0 0.0
  %270 = vmatpush1.msra.mxu0 0.0
  %271 = vmatprep.subr.mxu0 0.0
  %272 = vmatpush1.msra.mxu0 0.0
  %273 = vmatprep.subr.mxu0 0.0
  %274 = vmatpush1.msra.mxu0 0.0
  %275 = vmatprep.subr.mxu0 0.0
  %276 = vmatpush1.msra.mxu0 0.0
  %277 = vmatprep.subr.mxu0 0.0
  %278 = vmatpush1.msra.mxu0 0.0
  %279 = vmatprep.subr.mxu0 0.0
  %280 = vmatpush1.msra.mxu0 0.0
  %281 = vmatprep.subr.mxu0 0.0
  %282 = vmatpush1.msra.mxu0 0.0
  %283 = vmatprep.subr.mxu0 0.0
  %284 = vmatpush1.msra.mxu0 0.0
  %285 = vmatprep.subr.mxu0 0.0
  %286 = vmatpush1.msra.mxu0 0.0
  %287 = vmatprep.subr.mxu0 0.0
  %288 = vmatpush1.msra.mxu0 0.0
  %289 = vmatprep.subr.mxu0 0.0
  %290 = vmatpush1.msra.mxu0 0.0
  %291 = vmatprep.subr.mxu0 0.0
  %292 = vmatpush1.msra.mxu0 %v219
  %293 = vmatprep.subr.mxu0 0.0
  %294 = vmatpush2.msra.mxu0 0.0
  %295 = vmatprep.subr.mxu0 0.0
  %296 = vmatpush2.msra.mxu0 0.0
  %297 = vmatprep.subr.mxu0 0.0
  %298 = vmatpush2.msra.mxu0 0.0
  %299 = vmatprep.subr.mxu0 0.0
  %300 = vmatpush2.msra.mxu0 0.0
  %301 = vmatprep.subr.mxu0 0.0
  %302 = vmatpush2.msra.mxu0 0.0
  %303 = vmatprep.subr.mxu0 0.0
  %304 = vmatpush2.msra.mxu0 0.0
  %305 = vmatprep.subr.mxu0 0.0
  %306 = vmatpush2.msra.mxu0 0.0
  %307 = vmatprep.subr.mxu0 0.0
  %308 = vmatpush2.msra.mxu0 0.0
  %309 = vmatprep.subr.mxu0 0.0
  %310 = vmatpush2.msra.mxu0 0.0
  %311 = vmatprep.subr.mxu0 0.0
  %312 = vmatpush2.msra.mxu0 0.0
  %313 = vmatprep.subr.mxu0 0.0
  %314 = vmatpush2.msra.mxu0 0.0
  %315 = vmatprep.subr.mxu0 0.0
  %316 = vmatpush2.msra.mxu0 0.0
  %317 = vmatprep.subr.mxu0 0.0
  %318 = vmatpush2.msra.mxu0 0.0
  %319 = vmatprep.subr.mxu0 0.0
  %320 = vmatpush2.msra.mxu0 0.0
  %321 = vmatprep.subr.mxu0 0.0
  %322 = vmatpush2.msra.mxu0 0.0
  %323 = vmatprep.subr.mxu0 0.0
  %324 = vmatpush2.msra.mxu0 0.0
  %325 = vmatprep.mubr.f32.mxu0 0.0
  %326 = vmatmul.mubr.f32.gmra.mxu0 %v250
  %v327 = vpop.f32.mrf.mxu0
  %v328 = vadd.f32 %v231, %v327
  %v329 = vpop.f32.mrf.mxu0
  %330 = vmatprep.mubr.f32.mxu0 0.0
  %331 = vmatmul.mubr.f32.gmra.mxu0 %v253
  %v332 = vpop.f32.mrf.mxu0
  %v333 = vadd.f32 %v236, %v332
  %v334 = vpop.f32.mrf.mxu0
  %335 = vmatprep.mubr.f32.mxu0 0.0
  %336 = vmatmul.mubr.f32.gmra.mxu0 %v256
  %v337 = vpop.f32.mrf.mxu0
  %v338 = vadd.f32 %v241, %v337
  %v339 = vpop.f32.mrf.mxu0
  %340 = vmatprep.mubr.f32.mxu0 0.0
  %341 = vmatmul.mubr.f32.gmra.mxu0 %v259
  %v342 = vpop.f32.mrf.mxu0
  %v343 = vadd.f32 %v246, %v342
  %v344 = vpop.f32.mrf.mxu0
  %345 = vdwg.mxu0
  %v346 = vmax.f32 %v328, 0.0
  %v347 = vmax.f32 %v333, 0.0
  %v348 = vmax.f32 %v338, 0.0
  %v349 = vmax.f32 %v343, 0.0
  %v350 = vld [vmem:[%s2 + $0x98] sm:$0xff]
  %v351 = vld [vmem:[%s2 + $0xa0] sm:$0xff]
  %v352 = vld [vmem:[%s1] sm:$0x1]
  %354 = vset.pattern.permute.xlu0 2
  %355 = vperm.xlu0 %354, %v350
  %v356 = vpop.permute.xlu0 %355
  %359 = vset.pattern.permute.xlu0 2
  %360 = vperm.xlu0 %359, %v351
  %v361 = vpop.permute.xlu0 %360
  %v363 = vlaneseq
  %v364 = vshrl.u32 %v363, 7
  %v365 = vsub.s32 0, %v364
  %v366 = vrot.slane %v352, %v365
  %v367 = vmul.f32 %v356, %v366
  %v368 = vmul.f32 %v361, %v366
  %369 = vset.pattern.permute.xlu0 3
  %370 = vperm.xlu0 %369, %v350
  %v371 = vpop.permute.xlu0 %370
  %373 = vset.pattern.permute.xlu0 3
  %374 = vperm.xlu0 %373, %v351
  %v375 = vpop.permute.xlu0 %374
  %v377 = vadd.f32 %v367, %v371
  %v378 = vadd.f32 %v368, %v375
  %v379 = vmax.f32 %v377, 0.0
  %v380 = vmax.f32 %v378, 0.0
  %v381 = vld [vmem:[%s1 + $0x1] sm:$0x1]
  %382 = vset.pattern.permute.xlu0 8
  %383 = vperm.xlu0 %382, %v350
  %v384 = vpop.permute.xlu0 %383
  %386 = vset.pattern.permute.xlu0 8
  %387 = vperm.xlu0 %386, %v351
  %v388 = vpop.permute.xlu0 %387
  %v390 = vlaneseq
  %v391 = vshrl.u32 %v390, 7
  %v392 = vsub.s32 0, %v391
  %v393 = vrot.slane %v381, %v392
  %v394 = vmul.f32 %v384, %v393
  %v395 = vmul.f32 %v388, %v393
  %396 = vset.pattern.permute.xlu0 4
  %397 = vperm.xlu0 %396, %v350
  %v398 = vpop.permute.xlu0 %397
  %400 = vset.pattern.permute.xlu0 4
  %401 = vperm.xlu0 %400, %v351
  %v402 = vpop.permute.xlu0 %401
  %v404 = vadd.f32 %v398, %v394
  %v405 = vadd.f32 %v402, %v395
  %v406 = vld [vmem:[%s1 + $0x2] sm:$0x1]
  %407 = vset.pattern.permute.xlu0 9
  %408 = vperm.xlu0 %407, %v350
  %v409 = vpop.permute.xlu0 %408
  %411 = vset.pattern.permute.xlu0 9
  %412 = vperm.xlu0 %411, %v351
  %v413 = vpop.permute.xlu0 %412
  %v415 = vlaneseq
  %v416 = vshrl.u32 %v415, 7
  %v417 = vsub.s32 0, %v416
  %v418 = vrot.slane %v406, %v417
  %v419 = vmul.f32 %v409, %v418
  %v420 = vmul.f32 %v413, %v418
  %v421 = vadd.f32 %v404, %v419
  %v422 = vadd.f32 %v405, %v420
  %v423 = vld [vmem:[%s1 + $0x3] sm:$0x1]
  %424 = vset.pattern.permute.xlu0 10
  %425 = vperm.xlu0 %424, %v350
  %v426 = vpop.permute.xlu0 %425
  %428 = vset.pattern.permute.xlu0 10
  %429 = vperm.xlu0 %428, %v351
  %v430 = vpop.permute.xlu0 %429
  %v432 = vlaneseq
  %v433 = vshrl.u32 %v432, 7
  %v434 = vsub.s32 0, %v433
  %v435 = vrot.slane %v423, %v434
  %v436 = vmul.f32 %v426, %v435
  %v437 = vmul.f32 %v430, %v435
  %v438 = vadd.f32 %v421, %v436
  %v439 = vadd.f32 %v422, %v437
  %v440 = vld [vmem:[%s1 + $0x4] sm:$0x1]
  %441 = vset.pattern.permute.xlu0 11
  %442 = vperm.xlu0 %441, %v350
  %v443 = vpop.permute.xlu0 %442
  %445 = vset.pattern.permute.xlu0 11
  %446 = vperm.xlu0 %445, %v351
  %v447 = vpop.permute.xlu0 %446
  %v449 = vlaneseq
  %v450 = vshrl.u32 %v449, 7
  %v451 = vsub.s32 0, %v450
  %v452 = vrot.slane %v440, %v451
  %v453 = vmul.f32 %v443, %v452
  %v454 = vmul.f32 %v447, %v452
  %v455 = vadd.f32 %v438, %v453
  %v456 = vadd.f32 %v439, %v454
  %v457 = vmax.f32 %v455, 0.0
  %v458 = vmax.f32 %v456, 0.0
  %v459 = vld [vmem:[%s2 + $0x28] sm:$0xff]
  %v460 = vld [vmem:[%s2 + $0x30] sm:$0xff]
  %v461 = vld [vmem:[%s2 + $0x38] sm:$0xff]
  %v462 = vld [vmem:[%s2 + $0x40] sm:$0xff]
  %463 = vset.pattern.permute.xlu0 5
  %464 = vperm.xlu0 %463, %v224
  %v465 = vpop.permute.xlu0 %464
  %467 = vset.pattern.permute.xlu0 5
  %468 = vperm.xlu0 %467, %v225
  %v469 = vpop.permute.xlu0 %468
  %471 = vset.pattern.permute.xlu0 5
  %472 = vperm.xlu0 %471, %v226
  %v473 = vpop.permute.xlu0 %472
  %475 = vset.pattern.permute.xlu0 5
  %476 = vperm.xlu0 %475, %v227
  %v477 = vpop.permute.xlu0 %476
  %vm479 = vcmask 261120
  %v481 = vsel %vm479, %v459, 0
  %v484 = vsel %vm479, %v460, 0
  %v487 = vsel %vm479, %v461, 0
  %v490 = vsel %vm479, %v462, 0
  %492 = vmatprep.subr.mxu0 0.0
  %493 = vmatpush1.msra.mxu0 0.0
  %494 = vmatprep.subr.mxu0 0.0
  %495 = vmatpush1.msra.mxu0 0.0
  %496 = vmatprep.subr.mxu0 0.0
  %497 = vmatpush1.msra.mxu0 0.0
  %498 = vmatprep.subr.mxu0 0.0
  %499 = vmatpush1.msra.mxu0 0.0
  %500 = vmatprep.subr.mxu0 0.0
  %501 = vmatpush1.msra.mxu0 0.0
  %502 = vmatprep.subr.mxu0 0.0
  %503 = vmatpush1.msra.mxu0 0.0
  %504 = vmatprep.subr.mxu0 0.0
  %505 = vmatpush1.msra.mxu0 0.0
  %506 = vmatprep.subr.mxu0 0.0
  %507 = vmatpush1.msra.mxu0 0.0
  %508 = vmatprep.subr.mxu0 0.0
  %509 = vmatpush1.msra.mxu0 0.0
  %510 = vmatprep.subr.mxu0 0.0
  %511 = vmatpush1.msra.mxu0 0.0
  %512 = vmatprep.subr.mxu0 0.0
  %513 = vmatpush1.msra.mxu0 0.0
  %514 = vmatprep.subr.mxu0 0.0
  %515 = vmatpush1.msra.mxu0 0.0
  %516 = vmatprep.subr.mxu0 0.0
  %517 = vmatpush1.msra.mxu0 %v458
  %518 = vmatprep.subr.mxu0 0.0
  %519 = vmatpush1.msra.mxu0 %v457
  %520 = vmatprep.subr.mxu0 0.0
  %521 = vmatpush1.msra.mxu0 %v380
  %522 = vmatprep.subr.mxu0 0.0
  %523 = vmatpush1.msra.mxu0 %v379
  %524 = vmatprep.subr.mxu0 0.0
  %525 = vmatpush2.msra.mxu0 0.0
  %526 = vmatprep.subr.mxu0 0.0
  %527 = vmatpush2.msra.mxu0 0.0
  %528 = vmatprep.subr.mxu0 0.0
  %529 = vmatpush2.msra.mxu0 0.0
  %530 = vmatprep.subr.mxu0 0.0
  %531 = vmatpush2.msra.mxu0 0.0
  %532 = vmatprep.subr.mxu0 0.0
  %533 = vmatpush2.msra.mxu0 0.0
  %534 = vmatprep.subr.mxu0 0.0
  %535 = vmatpush2.msra.mxu0 0.0
  %536 = vmatprep.subr.mxu0 0.0
  %537 = vmatpush2.msra.mxu0 0.0
  %538 = vmatprep.subr.mxu0 0.0
  %539 = vmatpush2.msra.mxu0 0.0
  %540 = vmatprep.subr.mxu0 0.0
  %541 = vmatpush2.msra.mxu0 0.0
  %542 = vmatprep.subr.mxu0 0.0
  %543 = vmatpush2.msra.mxu0 0.0
  %544 = vmatprep.subr.mxu0 0.0
  %545 = vmatpush2.msra.mxu0 0.0
  %546 = vmatprep.subr.mxu0 0.0
  %547 = vmatpush2.msra.mxu0 0.0
  %548 = vmatprep.subr.mxu0 0.0
  %549 = vmatpush2.msra.mxu0 0.0
  %550 = vmatprep.subr.mxu0 0.0
  %551 = vmatpush2.msra.mxu0 0.0
  %552 = vmatprep.subr.mxu0 0.0
  %553 = vmatpush2.msra.mxu0 0.0
  %554 = vmatprep.subr.mxu0 0.0
  %555 = vmatpush2.msra.mxu0 0.0
  %556 = vmatprep.mubr.f32.mxu0 0.0
  %557 = vmatmul.mubr.f32.gmra.mxu0 %v481
  %v558 = vpop.f32.mrf.mxu0
  %v559 = vadd.f32 %v465, %v558
  %v560 = vpop.f32.mrf.mxu0
  %561 = vmatprep.mubr.f32.mxu0 0.0
  %562 = vmatmul.mubr.f32.gmra.mxu0 %v484
  %v563 = vpop.f32.mrf.mxu0
  %v564 = vadd.f32 %v469, %v563
  %v565 = vpop.f32.mrf.mxu0
  %566 = vmatprep.mubr.f32.mxu0 0.0
  %567 = vmatmul.mubr.f32.gmra.mxu0 %v487
  %v568 = vpop.f32.mrf.mxu0
  %v569 = vadd.f32 %v473, %v568
  %v570 = vpop.f32.mrf.mxu0
  %571 = vmatprep.mubr.f32.mxu0 0.0
  %572 = vmatmul.mubr.f32.gmra.mxu0 %v490
  %v573 = vpop.f32.mrf.mxu0
  %v574 = vadd.f32 %v477, %v573
  %v575 = vpop.f32.mrf.mxu0
  %576 = vdwg.mxu0
  %v577 = vld [vmem:[%s2 + $0x48] sm:$0xff]
  %v578 = vld [vmem:[%s2 + $0x50] sm:$0xff]
  %v579 = vld [vmem:[%s2 + $0x58] sm:$0xff]
  %v580 = vld [vmem:[%s2 + $0x60] sm:$0xff]
  %v581 = vld [vmem:[%s2 + $0x68] sm:$0xff]
  %v582 = vld [vmem:[%s2 + $0x70] sm:$0xff]
  %v583 = vld [vmem:[%s2 + $0x78] sm:$0xff]
  %v584 = vld [vmem:[%s2 + $0x80] sm:$0xff]
  %v585 = vld [vmem:[%s2 + $0x98] sm:$0xff]
  %v586 = vld [vmem:[%s2 + $0xa0] sm:$0xff]
  %v587 = vld [vmem:[%s2 + $0xa8] sm:$0xff]
  %v588 = vld [vmem:[%s2 + $0xb0] sm:$0xff]
  %v589 = vld [vmem:[%s2 + $0xb8] sm:$0xff]
  %v590 = vld [vmem:[%s2 + $0xc0] sm:$0xff]
  %v591 = vld [vmem:[%s2 + $0xc8] sm:$0xff]
  %v592 = vld [vmem:[%s2 + $0xd0] sm:$0xff]
  %594 = vset.pattern.permute.xlu0 6
  %595 = vperm.xlu0 %594, %v585
  %v596 = vpop.permute.xlu0 %595
  %599 = vset.pattern.permute.xlu0 6
  %600 = vperm.xlu0 %599, %v586
  %v601 = vpop.permute.xlu0 %600
  %604 = vset.pattern.permute.xlu0 6
  %605 = vperm.xlu0 %604, %v587
  %v606 = vpop.permute.xlu0 %605
  %609 = vset.pattern.permute.xlu0 6
  %610 = vperm.xlu0 %609, %v588
  %v611 = vpop.permute.xlu0 %610
  %614 = vset.pattern.permute.xlu0 6
  %615 = vperm.xlu0 %614, %v589
  %v616 = vpop.permute.xlu0 %615
  %619 = vset.pattern.permute.xlu0 6
  %620 = vperm.xlu0 %619, %v590
  %v621 = vpop.permute.xlu0 %620
  %624 = vset.pattern.permute.xlu0 6
  %625 = vperm.xlu0 %624, %v591
  %v626 = vpop.permute.xlu0 %625
  %629 = vset.pattern.permute.xlu0 6
  %630 = vperm.xlu0 %629, %v592
  %v631 = vpop.permute.xlu0 %630
  %vm633 = vcmask 523264
  %v635 = vsel %vm633, %v577, 0
  %v638 = vsel %vm633, %v578, 0
  %v641 = vsel %vm633, %v579, 0
  %v644 = vsel %vm633, %v580, 0
  %v647 = vsel %vm633, %v581, 0
  %v650 = vsel %vm633, %v582, 0
  %v653 = vsel %vm633, %v583, 0
  %v656 = vsel %vm633, %v584, 0
  %658 = vmatprep.subr.mxu0 0.0
  %659 = vmatpush1.msra.mxu0 0.0
  %660 = vmatprep.subr.mxu0 0.0
  %661 = vmatpush1.msra.mxu0 0.0
  %662 = vmatprep.subr.mxu0 0.0
  %663 = vmatpush1.msra.mxu0 0.0
  %664 = vmatprep.subr.mxu0 0.0
  %665 = vmatpush1.msra.mxu0 0.0
  %666 = vmatprep.subr.mxu0 0.0
  %667 = vmatpush1.msra.mxu0 0.0
  %668 = vmatprep.subr.mxu0 0.0
  %669 = vmatpush1.msra.mxu0 0.0
  %670 = vmatprep.subr.mxu0 0.0
  %671 = vmatpush1.msra.mxu0 0.0
  %672 = vmatprep.subr.mxu0 0.0
  %673 = vmatpush1.msra.mxu0 0.0
  %674 = vmatprep.subr.mxu0 0.0
  %675 = vmatpush1.msra.mxu0 %v574
  %676 = vmatprep.subr.mxu0 0.0
  %677 = vmatpush1.msra.mxu0 %v569
  %678 = vmatprep.subr.mxu0 0.0
  %679 = vmatpush1.msra.mxu0 %v564
  %680 = vmatprep.subr.mxu0 0.0
  %681 = vmatpush1.msra.mxu0 %v559
  %682 = vmatprep.subr.mxu0 0.0
  %683 = vmatpush1.msra.mxu0 %v349
  %684 = vmatprep.subr.mxu0 0.0
  %685 = vmatpush1.msra.mxu0 %v348
  %686 = vmatprep.subr.mxu0 0.0
  %687 = vmatpush1.msra.mxu0 %v347
  %688 = vmatprep.subr.mxu0 0.0
  %689 = vmatpush1.msra.mxu0 %v346
  %690 = vmatprep.subr.mxu0 0.0
  %691 = vmatpush2.msra.mxu0 0.0
  %692 = vmatprep.subr.mxu0 0.0
  %693 = vmatpush2.msra.mxu0 0.0
  %694 = vmatprep.subr.mxu0 0.0
  %695 = vmatpush2.msra.mxu0 0.0
  %696 = vmatprep.subr.mxu0 0.0
  %697 = vmatpush2.msra.mxu0 0.0
  %698 = vmatprep.subr.mxu0 0.0
  %699 = vmatpush2.msra.mxu0 0.0
  %700 = vmatprep.subr.mxu0 0.0
  %701 = vmatpush2.msra.mxu0 0.0
  %702 = vmatprep.subr.mxu0 0.0
  %703 = vmatpush2.msra.mxu0 0.0
  %704 = vmatprep.subr.mxu0 0.0
  %705 = vmatpush2.msra.mxu0 0.0
  %706 = vmatprep.subr.mxu0 0.0
  %707 = vmatpush2.msra.mxu0 0.0
  %708 = vmatprep.subr.mxu0 0.0
  %709 = vmatpush2.msra.mxu0 0.0
  %710 = vmatprep.subr.mxu0 0.0
  %711 = vmatpush2.msra.mxu0 0.0
  %712 = vmatprep.subr.mxu0 0.0
  %713 = vmatpush2.msra.mxu0 0.0
  %714 = vmatprep.subr.mxu0 0.0
  %715 = vmatpush2.msra.mxu0 0.0
  %716 = vmatprep.subr.mxu0 0.0
  %717 = vmatpush2.msra.mxu0 0.0
  %718 = vmatprep.subr.mxu0 0.0
  %719 = vmatpush2.msra.mxu0 0.0
  %720 = vmatprep.subr.mxu0 0.0
  %721 = vmatpush2.msra.mxu0 0.0
  %722 = vmatprep.mubr.f32.mxu0 0.0
  %723 = vmatmul.mubr.f32.gmra.mxu0 %v635
  %v724 = vpop.f32.mrf.mxu0
  %v725 = vadd.f32 %v596, %v724
  %v726 = vpop.f32.mrf.mxu0
  %727 = vmatprep.mubr.f32.mxu0 0.0
  %728 = vmatmul.mubr.f32.gmra.mxu0 %v638
  %v729 = vpop.f32.mrf.mxu0
  %v730 = vadd.f32 %v601, %v729
  %v731 = vpop.f32.mrf.mxu0
  %732 = vmatprep.mubr.f32.mxu0 0.0
  %733 = vmatmul.mubr.f32.gmra.mxu0 %v641
  %v734 = vpop.f32.mrf.mxu0
  %v735 = vadd.f32 %v606, %v734
  %v736 = vpop.f32.mrf.mxu0
  %737 = vmatprep.mubr.f32.mxu0 0.0
  %738 = vmatmul.mubr.f32.gmra.mxu0 %v644
  %v739 = vpop.f32.mrf.mxu0
  %v740 = vadd.f32 %v611, %v739
  %v741 = vpop.f32.mrf.mxu0
  %742 = vmatprep.mubr.f32.mxu0 0.0
  %743 = vmatmul.mubr.f32.gmra.mxu0 %v647
  %v744 = vpop.f32.mrf.mxu0
  %v745 = vadd.f32 %v616, %v744
  %v746 = vpop.f32.mrf.mxu0
  %747 = vmatprep.mubr.f32.mxu0 0.0
  %748 = vmatmul.mubr.f32.gmra.mxu0 %v650
  %v749 = vpop.f32.mrf.mxu0
  %v750 = vadd.f32 %v621, %v749
  %v751 = vpop.f32.mrf.mxu0
  %752 = vmatprep.mubr.f32.mxu0 0.0
  %753 = vmatmul.mubr.f32.gmra.mxu0 %v653
  %v754 = vpop.f32.mrf.mxu0
  %v755 = vadd.f32 %v626, %v754
  %v756 = vpop.f32.mrf.mxu0
  %757 = vmatprep.mubr.f32.mxu0 0.0
  %758 = vmatmul.mubr.f32.gmra.mxu0 %v656
  %v759 = vpop.f32.mrf.mxu0
  %v760 = vadd.f32 %v631, %v759
  %v761 = vpop.f32.mrf.mxu0
  %762 = vdwg.mxu0
  %v763 = vmax.f32 %v725, 0.0
  %v764 = vmax.f32 %v730, 0.0
  %v765 = vmax.f32 %v735, 0.0
  %v766 = vmax.f32 %v740, 0.0
  %v767 = vmax.f32 %v745, 0.0
  %v768 = vmax.f32 %v750, 0.0
  %v769 = vmax.f32 %v755, 0.0
  %v770 = vmax.f32 %v760, 0.0
  %v771 = vld [vmem:[%s2 + $0x88] sm:$0xff]
  %v772 = vld [vmem:[%s2 + $0x90] sm:$0xff]
  %773 = vset.pattern.permute.xlu0 7
  %774 = vperm.xlu0 %773, %v350
  %v775 = vpop.permute.xlu0 %774
  %777 = vset.pattern.permute.xlu0 7
  %778 = vperm.xlu0 %777, %v351
  %v779 = vpop.permute.xlu0 %778
  %v782 = vsel %vm633, %v771, 0
  %v785 = vsel %vm633, %v772, 0
  %787 = vmatprep.subr.mxu0 0.0
  %788 = vmatpush1.msra.mxu0 0.0
  %789 = vmatprep.subr.mxu0 0.0
  %790 = vmatpush1.msra.mxu0 0.0
  %791 = vmatprep.subr.mxu0 0.0
  %792 = vmatpush1.msra.mxu0 0.0
  %793 = vmatprep.subr.mxu0 0.0
  %794 = vmatpush1.msra.mxu0 0.0
  %795 = vmatprep.subr.mxu0 0.0
  %796 = vmatpush1.msra.mxu0 0.0
  %797 = vmatprep.subr.mxu0 0.0
  %798 = vmatpush1.msra.mxu0 0.0
  %799 = vmatprep.subr.mxu0 0.0
  %800 = vmatpush1.msra.mxu0 0.0
  %801 = vmatprep.subr.mxu0 0.0
  %802 = vmatpush1.msra.mxu0 0.0
  %803 = vmatprep.subr.mxu0 0.0
  %804 = vmatpush1.msra.mxu0 %v770
  %805 = vmatprep.subr.mxu0 0.0
  %806 = vmatpush1.msra.mxu0 %v769
  %807 = vmatprep.subr.mxu0 0.0
  %808 = vmatpush1.msra.mxu0 %v768
  %809 = vmatprep.subr.mxu0 0.0
  %810 = vmatpush1.msra.mxu0 %v767
  %811 = vmatprep.subr.mxu0 0.0
  %812 = vmatpush1.msra.mxu0 %v766
  %813 = vmatprep.subr.mxu0 0.0
  %814 = vmatpush1.msra.mxu0 %v765
  %815 = vmatprep.subr.mxu0 0.0
  %816 = vmatpush1.msra.mxu0 %v764
  %817 = vmatprep.subr.mxu0 0.0
  %818 = vmatpush1.msra.mxu0 %v763
  %819 = vmatprep.subr.mxu0 0.0
  %820 = vmatpush2.msra.mxu0 0.0
  %821 = vmatprep.subr.mxu0 0.0
  %822 = vmatpush2.msra.mxu0 0.0
  %823 = vmatprep.subr.mxu0 0.0
  %824 = vmatpush2.msra.mxu0 0.0
  %825 = vmatprep.subr.mxu0 0.0
  %826 = vmatpush2.msra.mxu0 0.0
  %827 = vmatprep.subr.mxu0 0.0
  %828 = vmatpush2.msra.mxu0 0.0
  %829 = vmatprep.subr.mxu0 0.0
  %830 = vmatpush2.msra.mxu0 0.0
  %831 = vmatprep.subr.mxu0 0.0
  %832 = vmatpush2.msra.mxu0 0.0
  %833 = vmatprep.subr.mxu0 0.0
  %834 = vmatpush2.msra.mxu0 0.0
  %835 = vmatprep.subr.mxu0 0.0
  %836 = vmatpush2.msra.mxu0 0.0
  %837 = vmatprep.subr.mxu0 0.0
  %838 = vmatpush2.msra.mxu0 0.0
  %839 = vmatprep.subr.mxu0 0.0
  %840 = vmatpush2.msra.mxu0 0.0
  %841 = vmatprep.subr.mxu0 0.0
  %842 = vmatpush2.msra.mxu0 0.0
  %843 = vmatprep.subr.mxu0 0.0
  %844 = vmatpush2.msra.mxu0 0.0
  %845 = vmatprep.subr.mxu0 0.0
  %846 = vmatpush2.msra.mxu0 0.0
  %847 = vmatprep.subr.mxu0 0.0
  %848 = vmatpush2.msra.mxu0 0.0
  %849 = vmatprep.subr.mxu0 0.0
  %850 = vmatpush2.msra.mxu0 0.0
  %851 = vmatprep.mubr.f32.mxu0 0.0
  %852 = vmatmul.mubr.f32.gmra.mxu0 %v782
  %v853 = vpop.f32.mrf.mxu0
  %v854 = vadd.f32 %v775, %v853
  %v855 = vpop.f32.mrf.mxu0
  %856 = vmatprep.mubr.f32.mxu0 0.0
  %857 = vmatmul.mubr.f32.gmra.mxu0 %v785
  %v858 = vpop.f32.mrf.mxu0
  %v859 = vadd.f32 %v779, %v858
  %v860 = vpop.f32.mrf.mxu0
  %861 = vdwg.mxu0
  %v862 = vlaneseq
  %v863 = vshrl.u32 %v862, 7
  %v864 = vadd.s32 %v863, 8
  %vm865 = vcmp.gt.f32.partialorder %v854, 0.0
  %vm866 = vcmp.gt.f32.partialorder %v859, 0.0
  %v867 = vmin.f32 %v854, 0.0
  %v868 = vmin.f32 %v859, 0.0
  %v869 = vmul.f32 %v867, 1.442695
  %v870 = vpow.pop %v869
  %v871 = vmul.f32 %v868, 1.442695
  %v872 = vpow.pop %v871
  %v873 = vsub.f32 %v870, 1.0
  %v874 = vsub.f32 %v872, 1.0
  %v875 = vsel %vm865, %v854, %v873
  %v876 = vsel %vm866, %v859, %v874
  %v877 = vadd.f32 %v875, 1.0
  %v878 = vadd.f32 %v876, 1.0
  %vm879 = vcmp.lt.s32.totalorder %v863, 2
  %vm880 = vcmp.lt.s32.totalorder %v864, 2
  %vm881 = vcmp.lt.s32.totalorder %v863, 4
  %vm882 = vcmp.lt.s32.totalorder %v864, 4
  %vm883 = vcmp.eq.s32.totalorder %v863, 4
  %vm884 = vcmp.eq.s32.totalorder %v864, 4
  %v885 = vmax.f32 %v854, 0.0
  %v886 = vmax.f32 %v859, 0.0
  %vm887 = vcmp.eq.s32.totalorder %v863, 8
  %vm888 = vcmp.eq.s32.totalorder %v864, 8
  %v889 = vsel %vm887, %v854, 0.0
  %v890 = vsel %vm888, %v859, 0.0
  %v891 = vsel %vm883, %v885, %v889
  %v892 = vsel %vm884, %v886, %v890
  %v893 = vsel %vm881, %v877, %v891
  %v894 = vsel %vm882, %v878, %v892
  %v895 = vsel %vm879, %v854, %v893
  %v896 = vsel %vm880, %v859, %v894
  %vm897 = vcmask 15360
  %898 = vst.msk [vmem:[%s3] sm:$0xff] %vm897, %v895
  %899 = vst.msk [vmem:[%s3 + $0x8] sm:$0xff] %vm897, %v896
  // Predicated region
  $region14: #{forward.1} parent=0 // pred_check
    _
  $region15: #{forward.1} parent=0 // pred_check_branch
    %901 = sbr.rel (0) target = $region17
  $region16: #{forward.1} parent=0 // pred_region
    _
  $region17: #{forward.1} parent=0 // pred_fallthru
    _
  // Predicated region
  $region18: #{forward.1} parent=0 // pred_check
    _
  $region19: #{forward.1} parent=0 // pred_check_branch
    %903 = sbr.rel (0) target = $region21
  $region20: #{forward.1} parent=0 // pred_region
    _
  $region21: #{forward.1} parent=0 // pred_fallthru
    _

</llo_original>
